<compile_context>
chip_gen: v6e
topology: v6e:2x2x1
jax: 0.10.0
libtpu: 0.0.40
codegen_flags: <defaults>
</compile_context>

<pallas_src>
import math

import jax
import jax.numpy as jnp
from jax import lax
from jax.experimental import pallas as pl
from jax.experimental.pallas import tpu as pltpu


# Contract the last dim of both operands: x (B,K) . W (O,K) -> (B,O),
# i.e. x @ W^T without ever materializing W^T.
_DN = (((1,), (1,)), ((), ()))


def _partial(x_ref, wmu_ref, wsig_ref, eps_in_ref, bpack_ref):
    """Per-grid-step math: f32 partial (tb, to) contribution + eps_out row."""
    x = x_ref[...]                                    # (tb, tk) compute dtype
    eps_out = bpack_ref[0:1, :]                       # (1, to)  f32

    # mu path:    x @ W_mu^T              (MXU, f32 accumulation, no transpose)
    acc = lax.dot_general(x, wmu_ref[...], _DN,
                          preferred_element_type=jnp.float32)
    # sigma path: eps_out * ((x * eps_in) @ W_sigma^T); the eps_in multiply is
    # done in f32 (VPU), then cast back to the MXU input dtype.
    xs = (x.astype(jnp.float32) * eps_in_ref[...]).astype(x.dtype)
    acc += eps_out * lax.dot_general(xs, wsig_ref[...], _DN,
                                     preferred_element_type=jnp.float32)
    return acc, eps_out


def _kernel_f32_out(x_ref, wmu_ref, wsig_ref, eps_in_ref, bpack_ref, o_ref):
    """f32 output: accumulate directly into the resident output block."""
    k = pl.program_id(2)
    acc, eps_out = _partial(x_ref, wmu_ref, wsig_ref, eps_in_ref, bpack_ref)

    @pl.when(k == 0)
    def _():
        o_ref[...] = acc

    @pl.when(k > 0)
    def _():
        o_ref[...] += acc

    @pl.when(k == pl.num_programs(2) - 1)
    def _():
        o_ref[...] += bpack_ref[1:2, :] + bpack_ref[2:3, :] * eps_out


def _kernel_narrow_out(x_ref, wmu_ref, wsig_ref, eps_in_ref, bpack_ref,
                       o_ref, acc_ref):
    """Narrow (e.g. bf16) output: f32 scratch accumulator + one finalize cast."""
    k = pl.program_id(2)
    acc, eps_out = _partial(x_ref, wmu_ref, wsig_ref, eps_in_ref, bpack_ref)

    @pl.when(k == 0)
    def _():
        acc_ref[...] = acc

    @pl.when(k > 0)
    def _():
        acc_ref[...] += acc

    @pl.when(k == pl.num_programs(2) - 1)
    def _():
        bias = bpack_ref[1:2, :] + bpack_ref[2:3, :] * eps_out
        o_ref[...] = (acc_ref[...] + bias).astype(o_ref.dtype)


def _round_up(x, m):
    return (x + m - 1) // m * m


def _pick_tile(dim, cap, align):
    """Choose (tile, padded_dim).

    Prefer the full (align-rounded) dim, else the largest align-multiple
    divisor of it <= cap, so no all-zero padded tiles are ever streamed from
    HBM.  Fall back to cap-multiple padding if the only divisors are tiny
    (which would re-stream the weights many times)."""
    dp = _round_up(dim, align)
    if dp <= cap:
        return dp, dp
    t = (cap // align) * align
    while t >= align and dp % t:
        t -= align
    if t * 4 < cap:                  # degenerate divisor -> pad up instead
        return cap, _round_up(dim, cap)
    return t, dp


def _pad2(a, rows, cols):
    r, c = a.shape
    if (r, c) == (rows, cols):
        return a
    return jnp.pad(a, ((0, rows - r), (0, cols - c)))


def noisy_linear(x, w_mu, w_sigma, b_mu, b_sigma, eps_in, eps_out, *,
                 tb=None, to=None, tk=None, compute_dtype=jnp.bfloat16):
    """NoisyLinear forward (factorized-noise form), output dtype == x.dtype.

        y = x @ (W_mu + W_sigma * outer(eps_out, eps_in))^T
            + (b_mu + b_sigma * eps_out)

    Matmul inputs are cast to `compute_dtype` (bf16 by default for HBM / MXU
    throughput; pass jnp.float32 for reference-exact numerics).  Accumulation,
    the eps scaling and the bias add are always f32.
    """
    B, I = x.shape
    O = w_mu.shape[0]
    out_dtype = x.dtype
    cdt = jnp.dtype(compute_dtype)

    auto_bo = (tb is None and to is None)

    # --- tile selection ------------------------------------------------------
    # Lane dims (O, I) in multiples of 128, batch in multiples of 16 (bf16
    # sublane packing).  Caps keep the double-buffered footprint ~20 MiB, far
    # under every generation's VMEM (64 MiB/TC on v7x, 128 MiB on v5e/v6e).
    if tb is None:
        tb, Bp = _pick_tile(B, cap=1024, align=16)
    else:
        Bp = _round_up(B, tb)
    if to is None:
        to, Op = _pick_tile(O, cap=512, align=128)
    else:
        Op = _round_up(O, to)
    if tk is None:
        ip0 = _round_up(I, 128)
        # Collapse the K axis entirely whenever I <= 2048.
        tk, Ip = _pick_tile(I, cap=(ip0 if ip0 <= 2048 else 1024), align=128)
    else:
        Ip = _round_up(I, tk)

    # v7x has two TensorCores: make sure there are >= 2 "parallel" (i, j)
    # blocks so the second core gets work.  Harmless on v5e/v6e.
    if auto_bo and (Bp // tb) * (Op // to) < 2:
        if to % 256 == 0:
            to //= 2
        elif tb % 32 == 0:
            tb //= 2

    # --- pad (+cast) operands ------------------------------------------------
    # Zero padding contributes exactly 0 to every output that survives the
    # final slice.  Weights / activations go to the compute dtype; the tiny
    # per-feature vectors (eps_in, eps_out, b_mu, b_sigma) stay f32.
    x_p = _pad2(x, Bp, Ip).astype(cdt)
    wmu_p = _pad2(w_mu, Op, Ip).astype(cdt)
    wsig_p = _pad2(w_sigma, Op, Ip).astype(cdt)
    eps_in_p = _pad2(eps_in.reshape(1, I).astype(jnp.float32), 1, Ip)
    bpack = jnp.stack([                               # (3, Op) f32
        jnp.pad(eps_out.astype(jnp.float32), (0, Op - O)),
        jnp.pad(b_mu.astype(jnp.float32), (0, Op - O)),
        jnp.pad(b_sigma.astype(jnp.float32), (0, Op - O)),
    ], axis=0)

    grid = (Bp // tb, Op // to, Ip // tk)             # reduction axis last

    f32_out = jnp.dtype(out_dtype) == jnp.dtype(jnp.float32)
    kernel = _kernel_f32_out if f32_out else _kernel_narrow_out
    scratch = [] if f32_out else [pltpu.VMEM((tb, to), jnp.float32)]

    # --- VMEM budget (generation-aware) & cost hint --------------------------
    csz = cdt.itemsize
    osz = jnp.dtype(out_dtype).itemsize
    vmem_need = (2 * tb * tk * csz                    # x        (double-buffered)
                 + 4 * to * tk * csz                  # W_mu + W_sigma (x2 bufs)
                 + 2 * tk * 4 + 6 * to * 4            # eps_in + packed bias/eps_out
                 + 2 * tb * to * osz                  # output
                 + (0 if f32_out else tb * to * 4))   # f32 accumulator scratch
    try:
        vmem_cap = pltpu.get_tpu_info().vmem_capacity_bytes
    except Exception:                                 # conservative fallback
        vmem_cap = 64 * 1024 * 1024
    ceiling = (vmem_cap * 3) // 4                     # ~48 MiB v7x, ~96 MiB v5e/v6e
    vmem_limit = int(min(ceiling, max(2 * vmem_need, 32 * 1024 * 1024)))

    cost = pl.CostEstimate(
        flops=4 * Bp * Op * Ip,                       # two matmuls
        transcendentals=0,
        bytes_accessed=(2 * Op * Ip * csz * (Bp // tb)    # weights re-streamed
                        + Bp * Ip * csz * (Op // to)      # x re-streamed
                        + Bp * Op * osz + Ip * 4 + 3 * Op * 4))

    # NOTE(v5e): if a trace ever shows exposed weight DMA there, add
    # pipeline_mode=pl.Buffered(3) to the two weight BlockSpecs below.
    out_p = pl.pallas_call(
        kernel,
        out_shape=jax.ShapeDtypeStruct((Bp, Op), out_dtype),
        grid_spec=pltpu.PrefetchScalarGridSpec(
            num_scalar_prefetch=0,
            grid=grid,
            in_specs=[
                pl.BlockSpec((tb, tk), lambda i, j, k: (i, k)),   # x
                pl.BlockSpec((to, tk), lambda i, j, k: (j, k)),   # W_mu
                pl.BlockSpec((to, tk), lambda i, j, k: (j, k)),   # W_sigma
                pl.BlockSpec((1, tk), lambda i, j, k: (0, k)),    # eps_in
                pl.BlockSpec((3, to), lambda i, j, k: (0, j)),    # [eps_out;b_mu;b_sigma]
            ],
            out_specs=pl.BlockSpec((tb, to), lambda i, j, k: (i, j)),
            scratch_shapes=scratch,
        ),
        compiler_params=pltpu.CompilerParams(
            dimension_semantics=("parallel", "parallel", "arbitrary"),
            vmem_limit_bytes=vmem_limit,
        ),
        cost_estimate=cost,
    )(x_p, wmu_p, wsig_p, eps_in_p, bpack)

    return out_p[:B, :O]


# ----------------------------- test harness ---------------------------------

def scale_noise(key, size):
    """Factorized gaussian noise: sign(x) * sqrt(|x|), x ~ N(0,1)."""
    x = jax.random.normal(key, (size,), dtype=jnp.float32)
    return jnp.sign(x) * jnp.sqrt(jnp.abs(x))


def init_noisy_linear_params(key, in_features, out_features, std_init=0.5):
    """Replicates NoisyLinear.reset_parameters / reset_noise (JAX RNG)."""
    k_wmu, k_bmu, k_ein, k_eout = jax.random.split(key, 4)
    mu_range = 1.0 / math.sqrt(in_features)

    weight_mu = jax.random.uniform(
        k_wmu, (out_features, in_features), jnp.float32, -mu_range, mu_range)
    weight_sigma = jnp.full((out_features, in_features),
                            std_init / math.sqrt(in_features), jnp.float32)
    bias_mu = jax.random.uniform(
        k_bmu, (out_features,), jnp.float32, -mu_range, mu_range)
    bias_sigma = jnp.full((out_features,),
                          std_init / math.sqrt(out_features), jnp.float32)

    epsilon_in = scale_noise(k_ein, in_features)
    epsilon_out = scale_noise(k_eout, out_features)
    return weight_mu, weight_sigma, bias_mu, bias_sigma, epsilon_in, epsilon_out


def _run_case(key, batch, in_features, out_features, *, x_dtype=jnp.float32,
              compute_dtype=jnp.bfloat16, atol=5e-2, rtol=5e-2, **tiles):
    k_params, k_x = jax.random.split(key)
    (w_mu, w_sigma, b_mu, b_sigma,
     eps_in, eps_out) = init_noisy_linear_params(k_params, in_features,
                                                 out_features)
    x = jax.random.normal(k_x, (batch, in_features), jnp.float32).astype(x_dtype)

    out = noisy_linear(x, w_mu, w_sigma, b_mu, b_sigma, eps_in, eps_out,
                       compute_dtype=compute_dtype, **tiles)
    out = jax.block_until_ready(out)

    # Dense f32 reference == the PyTorch module's forward (W_eps materialized).
    w_eff = w_mu + w_sigma * jnp.outer(eps_out, eps_in)
    b_eff = b_mu + b_sigma * eps_out
    ref = x.astype(jnp.float32) @ w_eff.T + b_eff

    assert out.shape == (batch, out_features)
    outf = out.astype(jnp.float32)
    err = float(jnp.max(jnp.abs(outf - ref)))
    assert jnp.allclose(outf, ref, atol=atol, rtol=rtol), err


if __name__ == "__main__":
    key = jax.random.PRNGKey(0)
    k1, k2, k3, k4 = jax.random.split(key, 4)

    # 1) Exact-semantics check: f32 compute path, tight tolerance.
    _run_case(k1, batch=8, in_features=32, out_features=64,
              compute_dtype=jnp.float32, atol=1e-4, rtol=1e-4)
    # 2) Multi-tile grid + K-reduction into the resident f32 output block.
    _run_case(k2, batch=24, in_features=384, out_features=256,
              compute_dtype=jnp.float32, atol=1e-4, rtol=1e-4,
              tb=16, to=128, tk=128)
    # 3) Default fast path: bf16 MXU inputs, auto tiles (incl. the v7x
    #    two-parallel-block split).  bf16 input rounding -> relaxed tolerance.
    _run_case(k3, batch=32, in_features=256, out_features=256)
    # 4) bf16 activations/output: exercises the f32-scratch finalize path.
    _run_case(k4, batch=16, in_features=128, out_features=128,
              x_dtype=jnp.bfloat16)

    # TODO(synk): torch's CPU RNG for reset_parameters/reset_noise is not
    # bit-reproducible from JAX; initialization here uses jax.random instead.
    print("KERNEL_OK")
</pallas_src>

<mosaic_0001>
module attributes {stable_mosaic.version = 11 : i64} {
  func.func @_kernel_f32_out(%arg0: i32, %arg1: i32, %arg2: i32, %arg3: memref<16x128xf32, #tpu.memory_space<vmem>>, %arg4: memref<128x128xf32, #tpu.memory_space<vmem>>, %arg5: memref<128x128xf32, #tpu.memory_space<vmem>>, %arg6: memref<1x128xf32, #tpu.memory_space<vmem>>, %arg7: memref<3x128xf32, #tpu.memory_space<vmem>>, %arg8: memref<16x128xf32, #tpu.memory_space<vmem>>) attributes {dimension_semantics = [#tpu.dimension_semantics<parallel>, #tpu.dimension_semantics<parallel>, #tpu.dimension_semantics<arbitrary>], iteration_bounds = array<i64: 1, 1, 1>, scalar_prefetch = 0 : i64, scratch_operands = 0 : i64, tpu.core_type = #tpu.core_type<tc>, window_params = [{transform_indices = @transform_0, window_bounds = array<i64: 16, 128>}, {transform_indices = @transform_1, window_bounds = array<i64: 128, 128>}, {transform_indices = @transform_2, window_bounds = array<i64: 128, 128>}, {transform_indices = @transform_3, window_bounds = array<i64: 1, 128>}, {transform_indices = @transform_4, window_bounds = array<i64: 3, 128>}, {transform_indices = @transform_5, window_bounds = array<i64: 16, 128>}]} {
    %c0 = arith.constant 0 : index
    %c0_0 = arith.constant 0 : index
    %0 = vector.load %arg3[%c0, %c0_0] : memref<16x128xf32, #tpu.memory_space<vmem>>, vector<16x128xf32>
    %c0_1 = arith.constant 0 : index
    %c0_2 = arith.constant 0 : index
    %1 = vector.load %arg7[%c0_1, %c0_2] : memref<3x128xf32, #tpu.memory_space<vmem>>, vector<1x128xf32>
    %c0_3 = arith.constant 0 : index
    %c0_4 = arith.constant 0 : index
    %2 = vector.load %arg4[%c0_3, %c0_4] : memref<128x128xf32, #tpu.memory_space<vmem>>, vector<128x128xf32>
    %cst = arith.constant dense<0.000000e+00> : vector<16x128xf32>
    %3 = tpu.matmul %0, %2, %cst {dimension_numbers = #tpu.dot_dimension_numbers<[1], [1], [0], [0], [0, 0, 1, 0], [], []>} : vector<16x128xf32>, vector<128x128xf32>, vector<16x128xf32> -> vector<16x128xf32>
    %c0_5 = arith.constant 0 : index
    %c0_6 = arith.constant 0 : index
    %4 = vector.load %arg6[%c0_5, %c0_6] : memref<1x128xf32, #tpu.memory_space<vmem>>, vector<1x128xf32>
    %5 = vector.broadcast %4 : vector<1x128xf32> to vector<16x128xf32>
    %6 = arith.mulf %0, %5 : vector<16x128xf32>
    %c0_7 = arith.constant 0 : index
    %c0_8 = arith.constant 0 : index
    %7 = vector.load %arg5[%c0_7, %c0_8] : memref<128x128xf32, #tpu.memory_space<vmem>>, vector<128x128xf32>
    %cst_9 = arith.constant dense<0.000000e+00> : vector<16x128xf32>
    %8 = tpu.matmul %6, %7, %cst_9 {dimension_numbers = #tpu.dot_dimension_numbers<[1], [1], [0], [0], [0, 0, 1, 0], [], []>} : vector<16x128xf32>, vector<128x128xf32>, vector<16x128xf32> -> vector<16x128xf32>
    %9 = vector.broadcast %1 : vector<1x128xf32> to vector<16x128xf32>
    %10 = arith.mulf %9, %8 : vector<16x128xf32>
    %11 = arith.addf %3, %10 : vector<16x128xf32>
    %c0_i32 = arith.constant 0 : i32
    %12 = arith.cmpi eq, %arg2, %c0_i32 : i32
    %13 = arith.extui %12 : i1 to i32
    %c0_i32_10 = arith.constant 0 : i32
    %14 = arith.cmpi ne, %13, %c0_i32_10 : i32
    scf.if %14 {
      %c0_15 = arith.constant 0 : index
      %c0_16 = arith.constant 0 : index
      %21 = vector.load %arg8[%c0_15, %c0_16] : memref<16x128xf32, #tpu.memory_space<vmem>>, vector<16x128xf32>
      tpu.vector_store %arg8[%c0_15, %c0_16], %11 {strides = array<i32>} : memref<16x128xf32, #tpu.memory_space<vmem>>, vector<16x128xf32>,
    } else {
    }
    %c0_i32_11 = arith.constant 0 : i32
    %15 = arith.cmpi sgt, %arg2, %c0_i32_11 : i32
    %16 = arith.extui %15 : i1 to i32
    %c0_i32_12 = arith.constant 0 : i32
    %17 = arith.cmpi ne, %16, %c0_i32_12 : i32
    scf.if %17 {
      %c0_15 = arith.constant 0 : index
      %c0_16 = arith.constant 0 : index
      %21 = vector.load %arg8[%c0_15, %c0_16] : memref<16x128xf32, #tpu.memory_space<vmem>>, vector<16x128xf32>
      %22 = arith.addf %21, %11 : vector<16x128xf32>
      %c0_17 = arith.constant 0 : index
      %c0_18 = arith.constant 0 : index
      %23 = vector.load %arg8[%c0_17, %c0_18] : memref<16x128xf32, #tpu.memory_space<vmem>>, vector<16x128xf32>
      tpu.vector_store %arg8[%c0_17, %c0_18], %22 {strides = array<i32>} : memref<16x128xf32, #tpu.memory_space<vmem>>, vector<16x128xf32>,
    } else {
    }
    %c0_i32_13 = arith.constant 0 : i32
    %18 = arith.cmpi eq, %arg2, %c0_i32_13 : i32
    %19 = arith.extui %18 : i1 to i32
    %c0_i32_14 = arith.constant 0 : i32
    %20 = arith.cmpi ne, %19, %c0_i32_14 : i32
    scf.if %20 {
      %c0_15 = arith.constant 0 : index
      %c0_16 = arith.constant 0 : index
      %21 = vector.load %arg8[%c0_15, %c0_16] : memref<16x128xf32, #tpu.memory_space<vmem>>, vector<16x128xf32>
      %c1 = arith.constant 1 : index
      %c0_17 = arith.constant 0 : index
      %22 = vector.load %arg7[%c1, %c0_17] : memref<3x128xf32, #tpu.memory_space<vmem>>, vector<1x128xf32>
      %c2 = arith.constant 2 : index
      %c0_18 = arith.constant 0 : index
      %23 = vector.load %arg7[%c2, %c0_18] : memref<3x128xf32, #tpu.memory_space<vmem>>, vector<1x128xf32>
      %24 = arith.mulf %23, %1 : vector<1x128xf32>
      %25 = arith.addf %22, %24 : vector<1x128xf32>
      %26 = vector.broadcast %25 : vector<1x128xf32> to vector<16x128xf32>
      %27 = arith.addf %21, %26 : vector<16x128xf32>
      %c0_19 = arith.constant 0 : index
      %c0_20 = arith.constant 0 : index
      %28 = vector.load %arg8[%c0_19, %c0_20] : memref<16x128xf32, #tpu.memory_space<vmem>>, vector<16x128xf32>
      tpu.vector_store %arg8[%c0_19, %c0_20], %27 {strides = array<i32>} : memref<16x128xf32, #tpu.memory_space<vmem>>, vector<16x128xf32>,
    } else {
    }
    return
  }
  func.func @transform_0(%arg0: i32, %arg1: i32, %arg2: i32) -> (i32, i32) {
    %c0_i32 = arith.constant 0 : i32
    return %arg0, %arg2 : i32, i32
  }
  func.func @transform_1(%arg0: i32, %arg1: i32, %arg2: i32) -> (i32, i32) {
    %c0_i32 = arith.constant 0 : i32
    return %arg1, %arg2 : i32, i32
  }
  func.func @transform_2(%arg0: i32, %arg1: i32, %arg2: i32) -> (i32, i32) {
    %c0_i32 = arith.constant 0 : i32
    return %arg1, %arg2 : i32, i32
  }
  func.func @transform_3(%arg0: i32, %arg1: i32, %arg2: i32) -> (i32, i32) {
    %c0_i32 = arith.constant 0 : i32
    %c0_i32_0 = arith.constant 0 : i32
    return %c0_i32, %arg2 : i32, i32
  }
  func.func @transform_4(%arg0: i32, %arg1: i32, %arg2: i32) -> (i32, i32) {
    %c0_i32 = arith.constant 0 : i32
    %c0_i32_0 = arith.constant 0 : i32
    return %c0_i32, %arg1 : i32, i32
  }
  func.func @transform_5(%arg0: i32, %arg1: i32, %arg2: i32) -> (i32, i32) {
    %c0_i32 = arith.constant 0 : i32
    return %arg0, %arg1 : i32, i32
  }
}

</mosaic_0001>

<llo_original>
// kernel: tpu_custom_call.1
$region0: #{tpu_custom_call.1}
  #allocation0 [shape = 'u32[]', space=smem, size = 0x4, offset = 0x4, fixed_abs, tag = 'smem constant byte address 0x4 - core index']
  #allocation1 [shape = 'u32[144,128]{1,0:T(1,128)}', space=vmem, size = 0x12000, scoped, tag = 'internal scratch']
  %s0 = inlined_call_operand.hbm [shape: f32[16,128], index: 0, kind: input, shape index: {}]
  %s1 = inlined_call_operand.hbm [shape: f32[128,128], index: 1, kind: input, shape index: {}]
  %s2 = inlined_call_operand.hbm [shape: f32[128,128], index: 2, kind: input, shape index: {}]
  %s3 = inlined_call_operand.vmem [shape: f32[1,128], index: 3, kind: input, shape index: {}]
  %s4 = inlined_call_operand.vmem [shape: f32[3,128], index: 4, kind: input, shape index: {}]
  %s5 = inlined_call_operand.hbm [shape: f32[16,128], index: 5, kind: output, shape index: {}]
  %s6 = sld [smem:[#allocation0]]
  $region54: #{tpu_custom_call.1} parent=0
    _
  %s8 = ssub.s32 1, %s6
  %s9 = scalar_select 0, %s8, %s6
  $region1: #{tpu_custom_call.1} parent=0
    #allocation2 [shape = 'u8[8192]{0}', space=vmem, size = 0x2000, scoped, tag = 'input window, operand 0, single buffered']
    #allocation3 [shape = 's32[1]{0}', space=sflag, size = 0x4, scoped, tag = 'scoped memory for tpu_custom_call.1']
    #allocation4 [shape = 's32[1]{0}', space=sflag, size = 0x4, scoped, tag = 'scoped memory for tpu_custom_call.1']
    #allocation5 [shape = 'u8[65536]{0}', space=vmem, size = 0x10000, scoped, tag = 'input window, operand 1, single buffered']
    #allocation6 [shape = 's32[1]{0}', space=sflag, size = 0x4, scoped, tag = 'scoped memory for tpu_custom_call.1']
    #allocation7 [shape = 'u8[65536]{0}', space=vmem, size = 0x10000, scoped, tag = 'input window, operand 2, single buffered']
    #allocation8 [shape = 'u8[8192]{0}', space=vmem, size = 0x2000, scoped, tag = 'output window, operand 0, single buffered']
    %10 = vsyncpa [#allocation3], 0
    %11 = vsyncpa [#allocation6], 0
    %12 = vsyncpa [#allocation4], 0
    // Predicated region
    $region2: #{tpu_custom_call.1} parent=1 // pred_check
      _
    $region3: #{tpu_custom_call.1} parent=1 // pred_check_branch
      %14 = sbr.rel (0) target = $region5
    $region4: #{tpu_custom_call.1} parent=1 // pred_region
      %s16 = ssub.s32 256, 256
      %17 = vsyncadd [#allocation3], %s16
      %s18 = sshll.u32 [#allocation2], 4
      %s19 = int_to_ptr.vmem [resolvable:$true] %s18
      %24 = dma.hbm_to_vmem [thread:$0]  %s0, 256, %s19, [#allocation3], 128, 128, 8
    $region5: #{tpu_custom_call.1} parent=1 // pred_fallthru
      _
    // Predicated region
    $region6: #{tpu_custom_call.1} parent=1 // pred_check
      _
    $region7: #{tpu_custom_call.1} parent=1 // pred_check_branch
      %26 = sbr.rel (0) target = $region9
    $region8: #{tpu_custom_call.1} parent=1 // pred_region
      %s28 = ssub.s32 2048, 2048
      %29 = vsyncadd [#allocation6], %s28
      %s30 = sshll.u32 [#allocation5], 4
      %s31 = int_to_ptr.vmem [resolvable:$true] %s30
      %36 = dma.hbm_to_vmem [thread:$0]  %s1, 2048, %s31, [#allocation6], 128, 128, 8
    $region9: #{tpu_custom_call.1} parent=1 // pred_fallthru
      _
    // Predicated region
    $region10: #{tpu_custom_call.1} parent=1 // pred_check
      _
    $region11: #{tpu_custom_call.1} parent=1 // pred_check_branch
      %38 = sbr.rel (0) target = $region13
    $region12: #{tpu_custom_call.1} parent=1 // pred_region
      %s40 = ssub.s32 2048, 2048
      %41 = vsyncadd [#allocation6], %s40
      %s42 = sshll.u32 [#allocation7], 4
      %s43 = int_to_ptr.vmem [resolvable:$true] %s42
      %48 = dma.hbm_to_vmem [thread:$0]  %s2, 2048, %s43, [#allocation6], 128, 128, 8
    $region13: #{tpu_custom_call.1} parent=1 // pred_fallthru
      _
    // Predicated region
    $region14: #{tpu_custom_call.1} parent=1 // pred_check
      _
    $region15: #{tpu_custom_call.1} parent=1 // pred_check_branch
      %50 = sbr.rel (0) target = $region17
    $region16: #{tpu_custom_call.1} parent=1 // pred_region
      _
    $region17: #{tpu_custom_call.1} parent=1 // pred_fallthru
      _
    // Predicated region
    $region18: #{tpu_custom_call.1} parent=1 // pred_check
      _
    $region19: #{tpu_custom_call.1} parent=1 // pred_check_branch
      %52 = sbr.rel (0) target = $region21
    $region20: #{tpu_custom_call.1} parent=1 // pred_region
      _
    $region21: #{tpu_custom_call.1} parent=1 // pred_fallthru
      _
    // Predicated region
    $region22: #{tpu_custom_call.1} parent=1 // pred_check
      _
    $region23: #{tpu_custom_call.1} parent=1 // pred_check_branch
      %54 = sbr.rel (0) target = $region25
    $region24: #{tpu_custom_call.1} parent=1 // pred_region
      %55 = dma.done [#allocation3], 256
    $region25: #{tpu_custom_call.1} parent=1 // pred_fallthru
      _
    // Predicated region
    $region26: #{tpu_custom_call.1} parent=1 // pred_check
      _
    $region27: #{tpu_custom_call.1} parent=1 // pred_check_branch
      %57 = sbr.rel (0) target = $region29
    $region28: #{tpu_custom_call.1} parent=1 // pred_region
      %58 = dma.done [#allocation6], 2048
    $region29: #{tpu_custom_call.1} parent=1 // pred_fallthru
      _
    // Predicated region
    $region30: #{tpu_custom_call.1} parent=1 // pred_check
      _
    $region31: #{tpu_custom_call.1} parent=1 // pred_check_branch
      %60 = sbr.rel (0) target = $region33
    $region32: #{tpu_custom_call.1} parent=1 // pred_region
      %61 = dma.done [#allocation6], 2048
    $region33: #{tpu_custom_call.1} parent=1 // pred_fallthru
      _
    %v62 = vld [vmem:[#allocation2] sm:$0xff]
    %v63 = vld [vmem:[#allocation2 + $0x8] sm:$0xff]
    %v64 = vld [vmem:[%s4] sm:$0x1]
    %v65 = vld [vmem:[#allocation5] sm:$0xff]
    %v66 = vld [vmem:[#allocation5 + $0x8] sm:$0xff]
    %v67 = vld [vmem:[#allocation5 + $0x10] sm:$0xff]
    %v68 = vld [vmem:[#allocation5 + $0x18] sm:$0xff]
    %v69 = vld [vmem:[#allocation5 + $0x20] sm:$0xff]
    %v70 = vld [vmem:[#allocation5 + $0x28] sm:$0xff]
    %v71 = vld [vmem:[#allocation5 + $0x30] sm:$0xff]
    %v72 = vld [vmem:[#allocation5 + $0x38] sm:$0xff]
    %v73 = vld [vmem:[#allocation5 + $0x40] sm:$0xff]
    %v74 = vld [vmem:[#allocation5 + $0x48] sm:$0xff]
    %v75 = vld [vmem:[#allocation5 + $0x50] sm:$0xff]
    %v76 = vld [vmem:[#allocation5 + $0x58] sm:$0xff]
    %v77 = vld [vmem:[#allocation5 + $0x60] sm:$0xff]
    %v78 = vld [vmem:[#allocation5 + $0x68] sm:$0xff]
    %v79 = vld [vmem:[#allocation5 + $0x70] sm:$0xff]
    %v80 = vld [vmem:[#allocation5 + $0x78] sm:$0xff]
    %v81 = vld [vmem:[%s3] sm:$0x1]
    %v83 = vlaneseq
    %v84 = vshrl.u32 %v83, 7
    %v85 = vsub.s32 0, %v84
    %v86 = vrot.slane %v81, %v85
    %v88 = vmul.f32 %v62, %v86
    %v89 = vmul.f32 %v63, %v86
    %v90 = vld [vmem:[#allocation7] sm:$0xff]
    %v91 = vld [vmem:[#allocation7 + $0x8] sm:$0xff]
    %v92 = vld [vmem:[#allocation7 + $0x10] sm:$0xff]
    %v93 = vld [vmem:[#allocation7 + $0x18] sm:$0xff]
    %v94 = vld [vmem:[#allocation7 + $0x20] sm:$0xff]
    %v95 = vld [vmem:[#allocation7 + $0x28] sm:$0xff]
    %v96 = vld [vmem:[#allocation7 + $0x30] sm:$0xff]
    %v97 = vld [vmem:[#allocation7 + $0x38] sm:$0xff]
    %v98 = vld [vmem:[#allocation7 + $0x40] sm:$0xff]
    %v99 = vld [vmem:[#allocation7 + $0x48] sm:$0xff]
    %v100 = vld [vmem:[#allocation7 + $0x50] sm:$0xff]
    %v101 = vld [vmem:[#allocation7 + $0x58] sm:$0xff]
    %v102 = vld [vmem:[#allocation7 + $0x60] sm:$0xff]
    %v103 = vld [vmem:[#allocation7 + $0x68] sm:$0xff]
    %v104 = vld [vmem:[#allocation7 + $0x70] sm:$0xff]
    %v105 = vld [vmem:[#allocation7 + $0x78] sm:$0xff]
    %106 = vmatprep.subr.mxu0 0.0
    %107 = vmatpush1.xpose.msra.mxu0 %v105
    %108 = vmatprep.subr.mxu0 0.0
    %109 = vmatpush1.xpose.msra.mxu0 %v104
    %110 = vmatprep.subr.mxu0 0.0
    %111 = vmatpush1.xpose.msra.mxu0 %v103
    %112 = vmatprep.subr.mxu0 0.0
    %113 = vmatpush1.xpose.msra.mxu0 %v102
    %114 = vmatprep.subr.mxu0 0.0
    %115 = vmatpush1.xpose.msra.mxu0 %v101
    %116 = vmatprep.subr.mxu0 0.0
    %117 = vmatpush1.xpose.msra.mxu0 %v100
    %118 = vmatprep.subr.mxu0 0.0
    %119 = vmatpush1.xpose.msra.mxu0 %v99
    %120 = vmatprep.subr.mxu0 0.0
    %121 = vmatpush1.xpose.msra.mxu0 %v98
    %122 = vmatprep.subr.mxu0 0.0
    %123 = vmatpush1.xpose.msra.mxu0 %v97
    %124 = vmatprep.subr.mxu0 0.0
    %125 = vmatpush1.xpose.msra.mxu0 %v96
    %126 = vmatprep.subr.mxu0 0.0
    %127 = vmatpush1.xpose.msra.mxu0 %v95
    %128 = vmatprep.subr.mxu0 0.0
    %129 = vmatpush1.xpose.msra.mxu0 %v94
    %130 = vmatprep.subr.mxu0 0.0
    %131 = vmatpush1.xpose.msra.mxu0 %v93
    %132 = vmatprep.subr.mxu0 0.0
    %133 = vmatpush1.xpose.msra.mxu0 %v92
    %134 = vmatprep.subr.mxu0 0.0
    %135 = vmatpush1.xpose.msra.mxu0 %v91
    %136 = vmatprep.subr.mxu0 0.0
    %137 = vmatpush1.xpose.msra.mxu0 %v90
    %138 = vmatprep.subr.mxu0 0.0
    %139 = vmatpush2.xpose.msra.mxu0 0.0
    %140 = vmatprep.subr.mxu0 0.0
    %141 = vmatpush2.xpose.msra.mxu0 0.0
    %142 = vmatprep.subr.mxu0 0.0
    %143 = vmatpush2.xpose.msra.mxu0 0.0
    %144 = vmatprep.subr.mxu0 0.0
    %145 = vmatpush2.xpose.msra.mxu0 0.0
    %146 = vmatprep.subr.mxu0 0.0
    %147 = vmatpush2.xpose.msra.mxu0 0.0
    %148 = vmatprep.subr.mxu0 0.0
    %149 = vmatpush2.xpose.msra.mxu0 0.0
    %150 = vmatprep.subr.mxu0 0.0
    %151 = vmatpush2.xpose.msra.mxu0 0.0
    %152 = vmatprep.subr.mxu0 0.0
    %153 = vmatpush2.xpose.msra.mxu0 0.0
    %154 = vmatprep.subr.mxu0 0.0
    %155 = vmatpush2.xpose.msra.mxu0 0.0
    %156 = vmatprep.subr.mxu0 0.0
    %157 = vmatpush2.xpose.msra.mxu0 0.0
    %158 = vmatprep.subr.mxu0 0.0
    %159 = vmatpush2.xpose.msra.mxu0 0.0
    %160 = vmatprep.subr.mxu0 0.0
    %161 = vmatpush2.xpose.msra.mxu0 0.0
    %162 = vmatprep.subr.mxu0 0.0
    %163 = vmatpush2.xpose.msra.mxu0 0.0
    %164 = vmatprep.subr.mxu0 0.0
    %165 = vmatpush2.xpose.msra.mxu0 0.0
    %166 = vmatprep.subr.mxu0 0.0
    %167 = vmatpush2.xpose.msra.mxu0 0.0
    %168 = vmatprep.subr.mxu0 0.0
    %169 = vmatpush2.xpose.msra.mxu0 0.0
    %170 = vmatprep.mubr.f32.mxu0 0.0
    %171 = vmatmul.mubr.f32.gmra.mxu0 %v88
    %v172 = vpop.f32.mrf.mxu0
    %v173 = vadd.f32 0.0, %v172
    %v174 = vpop.f32.mrf.mxu0
    %175 = vmatprep.mubr.f32.mxu0 0.0
    %176 = vmatmul.mubr.f32.gmra.mxu0 %v89
    %v177 = vpop.f32.mrf.mxu0
    %v178 = vadd.f32 0.0, %v177
    %v179 = vpop.f32.mrf.mxu0
    %180 = vdwg.mxu0
    %v181 = vlaneseq
    %v182 = vshrl.u32 %v181, 7
    %v183 = vsub.s32 0, %v182
    %v184 = vrot.slane %v64, %v183
    %v185 = vmul.f32 %v184, %v173
    %v186 = vmul.f32 %v184, %v178
    %187 = vmatprep.subr.mxu0 0.0
    %188 = vmatpush1.xpose.msra.mxu0 %v80
    %189 = vmatprep.subr.mxu0 0.0
    %190 = vmatpush1.xpose.msra.mxu0 %v79
    %191 = vmatprep.subr.mxu0 0.0
    %192 = vmatpush1.xpose.msra.mxu0 %v78
    %193 = vmatprep.subr.mxu0 0.0
    %194 = vmatpush1.xpose.msra.mxu0 %v77
    %195 = vmatprep.subr.mxu0 0.0
    %196 = vmatpush1.xpose.msra.mxu0 %v76
    %197 = vmatprep.subr.mxu0 0.0
    %198 = vmatpush1.xpose.msra.mxu0 %v75
    %199 = vmatprep.subr.mxu0 0.0
    %200 = vmatpush1.xpose.msra.mxu0 %v74
    %201 = vmatprep.subr.mxu0 0.0
    %202 = vmatpush1.xpose.msra.mxu0 %v73
    %203 = vmatprep.subr.mxu0 0.0
    %204 = vmatpush1.xpose.msra.mxu0 %v72
    %205 = vmatprep.subr.mxu0 0.0
    %206 = vmatpush1.xpose.msra.mxu0 %v71
    %207 = vmatprep.subr.mxu0 0.0
    %208 = vmatpush1.xpose.msra.mxu0 %v70
    %209 = vmatprep.subr.mxu0 0.0
    %210 = vmatpush1.xpose.msra.mxu0 %v69
    %211 = vmatprep.subr.mxu0 0.0
    %212 = vmatpush1.xpose.msra.mxu0 %v68
    %213 = vmatprep.subr.mxu0 0.0
    %214 = vmatpush1.xpose.msra.mxu0 %v67
    %215 = vmatprep.subr.mxu0 0.0
    %216 = vmatpush1.xpose.msra.mxu0 %v66
    %217 = vmatprep.subr.mxu0 0.0
    %218 = vmatpush1.xpose.msra.mxu0 %v65
    %219 = vmatprep.subr.mxu0 0.0
    %220 = vmatpush2.xpose.msra.mxu0 0.0
    %221 = vmatprep.subr.mxu0 0.0
    %222 = vmatpush2.xpose.msra.mxu0 0.0
    %223 = vmatprep.subr.mxu0 0.0
    %224 = vmatpush2.xpose.msra.mxu0 0.0
    %225 = vmatprep.subr.mxu0 0.0
    %226 = vmatpush2.xpose.msra.mxu0 0.0
    %227 = vmatprep.subr.mxu0 0.0
    %228 = vmatpush2.xpose.msra.mxu0 0.0
    %229 = vmatprep.subr.mxu0 0.0
    %230 = vmatpush2.xpose.msra.mxu0 0.0
    %231 = vmatprep.subr.mxu0 0.0
    %232 = vmatpush2.xpose.msra.mxu0 0.0
    %233 = vmatprep.subr.mxu0 0.0
    %234 = vmatpush2.xpose.msra.mxu0 0.0
    %235 = vmatprep.subr.mxu0 0.0
    %236 = vmatpush2.xpose.msra.mxu0 0.0
    %237 = vmatprep.subr.mxu0 0.0
    %238 = vmatpush2.xpose.msra.mxu0 0.0
    %239 = vmatprep.subr.mxu0 0.0
    %240 = vmatpush2.xpose.msra.mxu0 0.0
    %241 = vmatprep.subr.mxu0 0.0
    %242 = vmatpush2.xpose.msra.mxu0 0.0
    %243 = vmatprep.subr.mxu0 0.0
    %244 = vmatpush2.xpose.msra.mxu0 0.0
    %245 = vmatprep.subr.mxu0 0.0
    %246 = vmatpush2.xpose.msra.mxu0 0.0
    %247 = vmatprep.subr.mxu0 0.0
    %248 = vmatpush2.xpose.msra.mxu0 0.0
    %249 = vmatprep.subr.mxu0 0.0
    %250 = vmatpush2.xpose.msra.mxu0 0.0
    %251 = vmatprep.mubr.f32.mxu0 0.0
    %252 = vmatmul.mubr.f32.gmra.mxu0 %v62
    %v253 = vpop.f32.mrf.mxu0
    %v254 = vadd.f32 %v185, %v253
    %v255 = vpop.f32.mrf.mxu0
    %256 = vmatprep.mubr.f32.mxu0 0.0
    %257 = vmatmul.mubr.f32.gmra.mxu0 %v63
    %v258 = vpop.f32.mrf.mxu0
    %v259 = vadd.f32 %v186, %v258
    %v260 = vpop.f32.mrf.mxu0
    %261 = vdwg.mxu0
    %p262 = scmp.eq.s32.totalorder 0, 0
    // Predicated region
    $region34: #{tpu_custom_call.1} parent=1 // pred_check
      %p263 = pneg %p262
    $region35: #{tpu_custom_call.1} parent=1 // pred_check_branch
      %265 = sbr.rel (%p263) target = $region37
    $region36: #{tpu_custom_call.1} parent=1 // pred_region
      %266 = vst [vmem:[#allocation8] sm:$0xff] %v254
      %267 = vst [vmem:[#allocation8 + $0x8] sm:$0xff] %v259
    $region37: #{tpu_custom_call.1} parent=1 // pred_fallthru
      _
    %p268 = scmp.gt.s32.totalorder 0, 0
    // Predicated region
    $region38: #{tpu_custom_call.1} parent=1 // pred_check
      %p269 = pneg %p268
    $region39: #{tpu_custom_call.1} parent=1 // pred_check_branch
      %271 = sbr.rel (%p269) target = $region41
    $region40: #{tpu_custom_call.1} parent=1 // pred_region
      %v272 = vld [vmem:[#allocation8] sm:$0xff]
      %v273 = vld [vmem:[#allocation8 + $0x8] sm:$0xff]
      %v274 = vadd.f32 %v272, %v254
      %v275 = vadd.f32 %v273, %v259
      %276 = vst [vmem:[#allocation8] sm:$0xff] %v274
      %277 = vst [vmem:[#allocation8 + $0x8] sm:$0xff] %v275
    $region41: #{tpu_custom_call.1} parent=1 // pred_fallthru
      _
    // Predicated region
    $region42: #{tpu_custom_call.1} parent=1 // pred_check
      %p278 = pneg %p262
    $region43: #{tpu_custom_call.1} parent=1 // pred_check_branch
      %280 = sbr.rel (%p278) target = $region45
    $region44: #{tpu_custom_call.1} parent=1 // pred_region
      %v281 = vld [vmem:[#allocation8] sm:$0xff]
      %v282 = vld [vmem:[#allocation8 + $0x8] sm:$0xff]
      %v283 = vld [vmem:[%s4 + $0x1] sm:$0x1]
      %v284 = vld [vmem:[%s4 + $0x2] sm:$0x1]
      %v285 = vmul.f32 %v284, %v64
      %v286 = vadd.f32 %v283, %v285
      %v287 = vlaneseq
      %v288 = vshrl.u32 %v287, 7
      %v289 = vsub.s32 0, %v288
      %v290 = vrot.slane %v286, %v289
      %v291 = vadd.f32 %v281, %v290
      %v292 = vadd.f32 %v282, %v290
      %293 = vst [vmem:[#allocation8] sm:$0xff] %v291
      %294 = vst [vmem:[#allocation8 + $0x8] sm:$0xff] %v292
    $region45: #{tpu_custom_call.1} parent=1 // pred_fallthru
      _
    // Predicated region
    $region46: #{tpu_custom_call.1} parent=1 // pred_check
      _
    $region47: #{tpu_custom_call.1} parent=1 // pred_check_branch
      %296 = sbr.rel (0) target = $region49
    $region48: #{tpu_custom_call.1} parent=1 // pred_region
      %s298 = ssub.s32 256, 256
      %299 = vsyncadd [#allocation4], %s298
      %s300 = sshll.u32 [#allocation8], 4
      %s301 = int_to_ptr.vmem [resolvable:$true] %s300
      %306 = dma.vmem_to_hbm [thread:$0]  %s301, 256, %s5, [#allocation4], 128, 128, 8
    $region49: #{tpu_custom_call.1} parent=1 // pred_fallthru
      _
    // Predicated region
    $region50: #{tpu_custom_call.1} parent=1 // pred_check
      _
    $region51: #{tpu_custom_call.1} parent=1 // pred_check_branch
      %308 = sbr.rel (0) target = $region53
    $region52: #{tpu_custom_call.1} parent=1 // pred_region
      %309 = dma.done [#allocation4], 256
    $region53: #{tpu_custom_call.1} parent=1 // pred_fallthru
      _
    %310 = vsyncpa [#allocation3], 1
    %311 = vsyncpa [#allocation6], 1
    %312 = vsyncpa [#allocation4], 1

</llo_original>
